<compile_context>
chip_gen: v7x
topology: tpu7x:2x2x1
jax: 0.10.0
libtpu: 0.0.40
codegen_flags: <defaults>
</compile_context>

<pallas_src>
import functools
import math

import jax
import jax.numpy as jnp
from jax import lax
from jax.experimental import pallas as pl
from jax.experimental.pallas import tpu as pltpu

FOCUSING_PARAM = 2.0        # module default; algebra below exploits exponent == 2
BALANCE_PARAM = 0.25
CLAMP_MIN = 1e-4
_LOG_CLAMP_MIN = math.log(CLAMP_MIN)
_NEG_WEIGHT = -(1.0 - BALANCE_PARAM)


def _focal_neg_kernel(x_ref, out_ref, *, total_rows, mask_rows, approx_recip):
    """(TB, C) logits tile -> (1, 1, C) lane-wise partial sums of the
    all-negative focal term  -(1-a) * p^2 * log(clip(1-p, 1e-4, 1))."""
    x = x_ref[...].astype(jnp.float32)           # (TB, C)
    tb, c = x.shape

    nx = -x
    e = jnp.exp(nx)                              # EUP push 1
    one_pe = 1.0 + e
    if approx_recip:
        p = pl.reciprocal(one_pe, approx=True)   # EUP push 2 (no NR refinement)
    else:
        p = 1.0 / one_pe                         # exact divide: keeps ref parity
    l1pe = jnp.log(one_pe)                       # EUP push 3
    # (log(1+e) instead of log1p: identical EUP cost, avoids relying on a
    #  lax.log1p lowering; both branches clamp so accuracy stays in tolerance.)
    # log(clip(1-p, 1e-4, 1)) == max(log(e/(1+e)), log 1e-4) == max(-x - l1pe, .)
    log_1mp = jnp.maximum(nx - l1pe, _LOG_CLAMP_MIN)

    ce = (_NEG_WEIGHT * log_1mp) * (p * p)

    if mask_rows:
        # Ragged last tile: rows beyond B hold garbage -> zero them out.
        row_ids = (lax.broadcasted_iota(jnp.int32, (tb, 1), 0)
                   + pl.program_id(0) * tb)
        ce = jnp.where(row_ids < total_rows, ce, 0.0)

    # Sublane-only reduce; lane-dense (1, 1, C) store (no masked (1,1) vst).
    out_ref[...] = jnp.sum(ce, axis=0, keepdims=True).reshape(1, 1, c)


def _choose_tile_rows(b, c):
    if b <= 8:
        return b
    # ~8 MiB of f32 logits per input buffer; x2 double-buffering stays well
    # inside the raised 48 MiB scoped VMEM on every generation (v7x: 64 MiB/TC).
    target = max(8, ((8 * 1024 * 1024) // (4 * c)) // 8 * 8)
    if b >= 16:
        # Keep >= 2 grid steps so the "parallel" axis can use both v7x cores.
        target = min(target, max(8, (b // 2) // 8 * 8))
    target = min(target, b)
    # Prefer a tb that divides B exactly -> mask_rows=False (no per-element
    # row-mask overhead on the binding VALU slot).
    tb = target
    while tb >= 8:
        if b % tb == 0:
            return tb
        tb -= 8
    return target     # fall back to ragged tiles + in-kernel row mask


def focal_loss(x, y, *, tile_rows=None, approx_recip=False):
    """x: (B, classes) float logits ; y: (B, next_best) integer class indices.

    Matches FocalLoss.forward (focusing_param=2, balance_param=0.25):
    returns ce.sum() / (B * next_best).
    """
    b, c = x.shape
    _, k = y.shape
    y = y.astype(jnp.int32)

    tb = tile_rows if tile_rows is not None else _choose_tile_rows(b, c)
    num_tiles = pl.cdiv(b, tb)

    kernel = functools.partial(
        _focal_neg_kernel, total_rows=b, mask_rows=(b % tb != 0),
        approx_recip=approx_recip)

    partials = pl.pallas_call(
        kernel,
        out_shape=jax.ShapeDtypeStruct((num_tiles, 1, c), jnp.float32),
        grid_spec=pltpu.PrefetchScalarGridSpec(
            num_scalar_prefetch=0,
            grid=(num_tiles,),
            in_specs=[pl.BlockSpec((tb, c), lambda i: (i, 0))],
            out_specs=pl.BlockSpec((1, 1, c), lambda i: (i, 0, 0)),
        ),
        compiler_params=pltpu.CompilerParams(
            dimension_semantics=("parallel",),
            vmem_limit_bytes=48 * 1024 * 1024,
        ),
        cost_estimate=pl.CostEstimate(
            flops=10 * b * c,
            transcendentals=3 * b * c,
            bytes_accessed=int(x.size) * x.dtype.itemsize + 4 * num_tiles * c,
        ),
    )(x)
    neg_sum = jnp.sum(partials)

    # ---- Positive-class correction, O(B*K), in plain JAX (per perf review).
    # The kernel summed the negative term everywhere; swap it for the positive
    # term at the scatter targets.  Duplicate indices within a row must be
    # deduplicated (torch scatter_ collapses them to a single 1).
    rows = jnp.arange(b, dtype=jnp.int32)[:, None]
    xp = x[rows, y].astype(jnp.float32)                     # (B, K) gather
    eq = y[:, :, None] == y[:, None, :]                     # (B, K, K)
    earlier = jnp.tril(jnp.ones((k, k), dtype=bool), -1)    # strictly earlier idx
    keep = ~jnp.any(eq & earlier[None], axis=-1)            # first occurrence only
    p = jax.nn.sigmoid(xp)
    pos_term = (-BALANCE_PARAM) * (1.0 - p) ** 2 * jnp.log(
        jnp.clip(p, CLAMP_MIN, 1.0))
    neg_term = (-(1.0 - BALANCE_PARAM)) * p * p * jnp.log(
        jnp.clip(1.0 - p, CLAMP_MIN, 1.0))
    correction = jnp.sum(jnp.where(keep, pos_term - neg_term, 0.0))

    return (neg_sum + correction) / float(b * k)


def focal_loss_ref(x, y):
    """Pure-JAX reference mirroring the PyTorch forward exactly."""
    b, c = x.shape
    _, k = y.shape
    t = jnp.zeros((b, c), jnp.float32).at[jnp.arange(b)[:, None], y].set(1.0)
    p = jax.nn.sigmoid(x.astype(jnp.float32))
    pos = jnp.where(t >= p, t - p, 0.0)
    neg = jnp.where(t <= 0.0, p, 0.0)
    ce = (-BALANCE_PARAM * pos ** 2 * jnp.log(jnp.clip(p, CLAMP_MIN, 1.0))
          - (1.0 - BALANCE_PARAM) * neg ** 2
          * jnp.log(jnp.clip(1.0 - p, CLAMP_MIN, 1.0)))
    return jnp.sum(ce) / float(b * k)


if __name__ == "__main__":
    # Tolerances sized for f32 reduction-order noise on ~10k-element sums.
    RTOL, ATOL = 5e-5, 1e-5

    # Case 1: nominal small shape (single tile) + a duplicated positive index.
    b, c, k = 8, 128, 2
    kx, ky = jax.random.split(jax.random.PRNGKey(0))
    x = jax.random.normal(kx, (b, c), dtype=jnp.float32)
    y = jax.random.randint(ky, (b, k), 0, c, dtype=jnp.int32)
    y = y.at[0, 1].set(y[0, 0])                 # exercise dedup path
    out = focal_loss(x, y)
    jax.block_until_ready(out)
    ref = focal_loss_ref(x, y)
    assert jnp.allclose(out, ref, rtol=RTOL, atol=ATOL), (out, ref)

    # Case 2: multi-tile grid with a ragged last tile (row masking), K=3 dedup.
    b2, c2, k2 = 40, 256, 3
    kx2, ky2 = jax.random.split(jax.random.PRNGKey(1))
    x2 = jax.random.normal(kx2, (b2, c2), dtype=jnp.float32)
    y2 = jax.random.randint(ky2, (b2, k2), 0, c2, dtype=jnp.int32)
    y2 = y2.at[3, 2].set(y2[3, 0])
    out2 = focal_loss(x2, y2, tile_rows=16)
    jax.block_until_ready(out2)
    ref2 = focal_loss_ref(x2, y2)
    assert jnp.allclose(out2, ref2, rtol=RTOL, atol=ATOL), (out2, ref2)

    # Case 3: automatic tile choice -> >= 2 tiles, divisor snap, no row mask.
    b3, c3, k3 = 64, 128, 2
    kx3, ky3 = jax.random.split(jax.random.PRNGKey(2))
    x3 = jax.random.normal(kx3, (b3, c3), dtype=jnp.float32)
    y3 = jax.random.randint(ky3, (b3, k3), 0, c3, dtype=jnp.int32)
    out3 = focal_loss(x3, y3)
    jax.block_until_ready(out3)
    ref3 = focal_loss_ref(x3, y3)
    assert jnp.allclose(out3, ref3, rtol=RTOL, atol=ATOL), (out3, ref3)

    print("KERNEL_OK")
</pallas_src>

<mosaic_0001>
module attributes {stable_mosaic.version = 11 : i64} {
  func.func @_focal_neg_kernel(%arg0: i32, %arg1: memref<8x128xf32, #tpu.memory_space<vmem>>, %arg2: memref<1x1x128xf32, #tpu.memory_space<vmem>>) attributes {dimension_semantics = [#tpu.dimension_semantics<parallel>], iteration_bounds = array<i64: 1>, scalar_prefetch = 0 : i64, scratch_operands = 0 : i64, tpu.core_type = #tpu.core_type<tc>, window_params = [{transform_indices = @transform_0, window_bounds = array<i64: 8, 128>}, {transform_indices = @transform_1, window_bounds = array<i64: 1, 1, 128>}]} {
    %c0 = arith.constant 0 : index
    %c0_0 = arith.constant 0 : index
    %0 = vector.load %arg1[%c0, %c0_0] : memref<8x128xf32, #tpu.memory_space<vmem>>, vector<8x128xf32>
    %cst = arith.constant 0.000000e+00 : f32
    %1 = vector.broadcast %cst : f32 to vector<8x128xf32>
    %2 = arith.subf %1, %0 : vector<8x128xf32>
    %3 = math.exp %2 : vector<8x128xf32>
    %cst_1 = arith.constant 1.000000e+00 : f32
    %4 = vector.broadcast %cst_1 : f32 to vector<8x128xf32>
    %5 = arith.addf %4, %3 : vector<8x128xf32>
    %cst_2 = arith.constant 1.000000e+00 : f32
    %6 = vector.broadcast %cst_2 : f32 to vector<8x128xf32>
    %7 = arith.divf %6, %5 : vector<8x128xf32>
    %8 = math.log %5 : vector<8x128xf32>
    %9 = arith.subf %2, %8 : vector<8x128xf32>
    %cst_3 = arith.constant -9.21034049 : f32
    %10 = vector.broadcast %cst_3 : f32 to vector<8x128xf32>
    %11 = arith.maximumf %9, %10 : vector<8x128xf32>
    %cst_4 = arith.constant -7.500000e-01 : f32
    %12 = vector.broadcast %cst_4 : f32 to vector<8x128xf32>
    %13 = arith.mulf %12, %11 : vector<8x128xf32>
    %14 = arith.mulf %7, %7 : vector<8x128xf32>
    %15 = arith.mulf %13, %14 : vector<8x128xf32>
    %cst_5 = arith.constant dense<0.000000e+00> : vector<128xf32>
    %16 = vector.multi_reduction <add>, %15, %cst_5 [0] : vector<8x128xf32> to vector<128xf32>
    %17 = vector.shape_cast %16 : vector<128xf32> to vector<1x128xf32>
    %18 = vector.shape_cast %17 : vector<1x128xf32> to vector<1x1x128xf32>
    %c0_6 = arith.constant 0 : index
    %c0_7 = arith.constant 0 : index
    %c0_8 = arith.constant 0 : index
    %19 = vector.load %arg2[%c0_6, %c0_7, %c0_8] : memref<1x1x128xf32, #tpu.memory_space<vmem>>, vector<1x1x128xf32>
    tpu.vector_store %arg2[%c0_6, %c0_7, %c0_8], %18 {strides = array<i32>} : memref<1x1x128xf32, #tpu.memory_space<vmem>>, vector<1x1x128xf32>,
    return
  }
  func.func @transform_0(%arg0: i32) -> (i32, i32) {
    %c0_i32 = arith.constant 0 : i32
    %c0_i32_0 = arith.constant 0 : i32
    return %arg0, %c0_i32 : i32, i32
  }
  func.func @transform_1(%arg0: i32) -> (i32, i32, i32) {
    %c0_i32 = arith.constant 0 : i32
    %c0_i32_0 = arith.constant 0 : i32
    %c0_i32_1 = arith.constant 0 : i32
    return %arg0, %c0_i32, %c0_i32_0 : i32, i32, i32
  }
}

</mosaic_0001>

<llo_original>
// kernel: tpu_custom_call.1
$region0: #{tpu_custom_call.1}
  #allocation0 [shape = 'u32[]', space=smem, size = 0x4, offset = 0x4, fixed_abs, tag = 'smem constant byte address 0x4 - core index']
  #allocation1 [shape = 'u32[144,128]{1,0:T(1,128)}', space=vmem, size = 0x12000, scoped, tag = 'internal scratch']
  %s0 = inlined_call_operand.hbm [shape: f32[8,128], index: 0, kind: input, shape index: {}]
  %s1 = inlined_call_operand.hbm [shape: f32[1,1,128], index: 1, kind: output, shape index: {}]
  %s2 = sld [smem:[#allocation0]]
  $region18: #{tpu_custom_call.1} parent=0
    _
  %s4 = ssub.s32 1, %s2
  %s5 = scalar_select 0, %s4, %s2
  $region1: #{tpu_custom_call.1} parent=0
    #allocation2 [shape = 'u8[4096]{0}', space=vmem, size = 0x1000, scoped, tag = 'input window, operand 0, single buffered']
    #allocation3 [shape = 's32[1]{0}', space=sflag, size = 0x4, scoped, tag = 'scoped memory for tpu_custom_call.1']
    #allocation4 [shape = 's32[1]{0}', space=sflag, size = 0x4, scoped, tag = 'scoped memory for tpu_custom_call.1']
    #allocation5 [shape = 'u8[512]{0}', space=vmem, size = 0x400, scoped, tag = 'output window, operand 0, single buffered']
    %6 = vsyncpa [#allocation3], 0
    %7 = vsyncpa [#allocation4], 0
    // Predicated region
    $region2: #{tpu_custom_call.1} parent=1 // pred_check
      _
    $region3: #{tpu_custom_call.1} parent=1 // pred_check_branch
      %9 = sbr.rel (0) target = $region5
    $region4: #{tpu_custom_call.1} parent=1 // pred_region
      %s11 = ssub.s32 128, 128
      %12 = vsyncadd [#allocation3], %s11
      %s14 = sshll.u32 [#allocation2], 4
      %s15 = int_to_ptr.vmem [resolvable:$true] %s14
      %17 = dma.hbm_to_vmem [thread:$0]  %s0, 128, %s15, [#allocation3]
    $region5: #{tpu_custom_call.1} parent=1 // pred_fallthru
      _
    // Predicated region
    $region6: #{tpu_custom_call.1} parent=1 // pred_check
      _
    $region7: #{tpu_custom_call.1} parent=1 // pred_check_branch
      %19 = sbr.rel (0) target = $region9
    $region8: #{tpu_custom_call.1} parent=1 // pred_region
      %20 = dma.done [#allocation3], 128
    $region9: #{tpu_custom_call.1} parent=1 // pred_fallthru
      _
    %v21 = vld [vmem:[#allocation2] sm:$0xff]
    %v22 = vsub.f32 0.0, %v21
    %v23 = vmul.f32 %v22, 1.442695
    %v24 = vpow.pop %v23
    %v25 = vadd.f32 %v24, 1.0
    %v26 = vrcp.pop %v25
    %v27 = vmul.f32 1.0, %v26
    %v28 = vlog2.pop %v25
    %v29 = vmul.f32 %v28, 0.6931472
    %v30 = vsub.f32 %v22, %v29
    %v31 = vmax.f32 %v30, -9.2103405
    %v32 = vmul.f32 %v31, -0.75
    %v33 = vmul.f32 %v27, %v27
    %v34 = vmul.f32 %v32, %v33
    %v35 = vrot.slane %v34, 4
    %v36 = vadd.f32 %v34, %v35
    %v37 = vrot.slane %v36, 2
    %v38 = vadd.f32 %v36, %v37
    %v39 = vrot.slane %v38, 1
    %v40 = vadd.f32 %v38, %v39
    %41 = vst [vmem:[#allocation5] sm:$0x1] %v40
    // Predicated region
    $region10: #{tpu_custom_call.1} parent=1 // pred_check
      _
    $region11: #{tpu_custom_call.1} parent=1 // pred_check_branch
      %43 = sbr.rel (0) target = $region13
    $region12: #{tpu_custom_call.1} parent=1 // pred_region
      %s45 = ssub.s32 16, 16
      %46 = vsyncadd [#allocation4], %s45
      %s48 = sshll.u32 [#allocation5], 4
      %s49 = int_to_ptr.vmem [resolvable:$true] %s48
      %51 = dma.vmem_to_hbm [thread:$0]  %s49, 16, %s1, [#allocation4]
    $region13: #{tpu_custom_call.1} parent=1 // pred_fallthru
      _
    // Predicated region
    $region14: #{tpu_custom_call.1} parent=1 // pred_check
      _
    $region15: #{tpu_custom_call.1} parent=1 // pred_check_branch
      %53 = sbr.rel (0) target = $region17
    $region16: #{tpu_custom_call.1} parent=1 // pred_region
      %54 = dma.done [#allocation4], 16
    $region17: #{tpu_custom_call.1} parent=1 // pred_fallthru
      _
    %55 = vsyncpa [#allocation3], 1
    %56 = vsyncpa [#allocation4], 1

</llo_original>
